<compile_context>
chip_gen: v6e
topology: v6e:2x2x1
jax: 0.10.0
libtpu: 0.0.40
codegen_flags: <defaults>
</compile_context>

<pallas_src>
import functools

import jax
import jax.numpy as jnp
from jax.experimental import pallas as pl
from jax.experimental.pallas import tpu as pltpu


def _cdiv(a, b):
    return (a + b - 1) // b


def _round_up(a, b):
    return _cdiv(a, b) * b


def _choose_tm(m, block_n):
    """Sublane rows (of 128 boxes each) per grid step."""
    tm_max = max(8, block_n // 128)
    if m <= 8:
        return 8
    # >=2 grid steps when possible (v7x megacore / pipelining) without
    # shrinking the tile below what amortizes per-step overhead.
    return max(8, min(tm_max, _round_up(_cdiv(m, 2), 8)))


def _rcp(x):
    # EUP approximate reciprocal + one Newton-Raphson step: EUP slot is free in
    # this kernel and the refinement's VALU cost hides under the DMA stream.
    r = pl.reciprocal(x, approx=True)
    return r * (2.0 - x * r)


def _loss_tile(x_ref, loss_type):
    """Per-box loss for one (8, TM, 128) plane block -> dense (TM, 128)."""
    f32 = jnp.float32
    p_cx = x_ref[0].astype(f32)
    p_cy = x_ref[1].astype(f32)
    p_w = x_ref[2].astype(f32)
    p_h = x_ref[3].astype(f32)
    t_cx = x_ref[4].astype(f32)
    t_cy = x_ref[5].astype(f32)
    t_w = x_ref[6].astype(f32)
    t_h = x_ref[7].astype(f32)

    p_hw, p_hh = p_w * 0.5, p_h * 0.5
    t_hw, t_hh = t_w * 0.5, t_h * 0.5

    p_x1, p_x2 = p_cx - p_hw, p_cx + p_hw
    p_y1, p_y2 = p_cy - p_hh, p_cy + p_hh
    t_x1, t_x2 = t_cx - t_hw, t_cx + t_hw
    t_y1, t_y2 = t_cy - t_hh, t_cy + t_hh

    tl_x = jnp.maximum(p_x1, t_x1)
    tl_y = jnp.maximum(p_y1, t_y1)
    br_x = jnp.minimum(p_x2, t_x2)
    br_y = jnp.minimum(p_y2, t_y2)

    area_p = p_w * p_h
    area_g = t_w * t_h
    # single vselect instead of bool-cast + multiply
    area_i = jnp.where((tl_x < br_x) & (tl_y < br_y),
                       (br_x - tl_x) * (br_y - tl_y), 0.0)
    area_u = area_p + area_g - area_i
    iou = area_i * _rcp(area_u + 1e-16)

    if loss_type == "iou":
        return 1.0 - iou * iou
    elif loss_type == "giou":
        c_w = jnp.maximum(p_x2, t_x2) - jnp.minimum(p_x1, t_x1)
        c_h = jnp.maximum(p_y2, t_y2) - jnp.minimum(p_y1, t_y1)
        area_c = c_w * c_h
        giou = iou - (area_c - area_u) * _rcp(area_c + 1e-16)
        return 1.0 - jnp.clip(giou, -1.0, 1.0)
    # TODO(synk): 'diou'/'ciou' center-distance & aspect-ratio terms are not
    # defined in the provided module source (calculate_iou not shown).
    raise NotImplementedError(f"loss_type={loss_type!r}")


def _iou_loss_map_kernel(x_ref, o_ref, *, loss_type):
    # x_ref: (8, TM, 128) planes; o_ref: (TM, 128) dense per-box loss.
    o_ref[...] = _loss_tile(x_ref, loss_type)


def _iou_loss_reduce_kernel(x_ref, o_ref, *, loss_type, n_valid, tm):
    # o_ref: (1, 128) lane-partial accumulator, resident across the grid.
    i = pl.program_id(0)

    @pl.when(i == 0)
    def _init():
        o_ref[...] = jnp.zeros_like(o_ref)

    loss = _loss_tile(x_ref, loss_type)                       # (tm, 128)
    row = jax.lax.broadcasted_iota(jnp.int32, loss.shape, 0)
    lane = jax.lax.broadcasted_iota(jnp.int32, loss.shape, 1)
    idx = (i * tm + row) * 128 + lane                         # global box id
    loss = jnp.where(idx < n_valid, loss, 0.0)                # mask pad / tail
    o_ref[...] += jnp.sum(loss, axis=0, keepdims=True)        # (1, 128) partial


def _run_planar(x, n, tm, *, reduction, loss_type):
    """x: (8, M, 128) planar slab [p_cx, p_cy, p_w, p_h, t_cx, t_cy, t_w, t_h]."""
    m = x.shape[1]
    grid = _cdiv(m, tm)
    in_spec = pl.BlockSpec((8, tm, 128), lambda i: (0, i, 0))

    if reduction in ("mean", "sum"):
        # Fused reduction: no (1, N) loss writeback to HBM.
        partials = pl.pallas_call(
            functools.partial(_iou_loss_reduce_kernel, loss_type=loss_type,
                              n_valid=n, tm=tm),
            out_shape=jax.ShapeDtypeStruct((1, 128), jnp.float32),
            grid_spec=pltpu.PrefetchScalarGridSpec(
                num_scalar_prefetch=0,
                grid=(grid,),
                in_specs=[in_spec],
                out_specs=pl.BlockSpec((1, 128), lambda i: (0, 0)),
            ),
            compiler_params=pltpu.CompilerParams(
                dimension_semantics=("arbitrary",)),  # shared accumulator
        )(x)
        total = jnp.sum(partials)                     # 128-element epilogue
        if reduction == "mean":
            total = total / jnp.float32(n)
        return total

    # 'none' (and any other string, matching the torch module): per-box loss.
    out = pl.pallas_call(
        functools.partial(_iou_loss_map_kernel, loss_type=loss_type),
        out_shape=jax.ShapeDtypeStruct((m, 128), jnp.float32),
        grid_spec=pltpu.PrefetchScalarGridSpec(
            num_scalar_prefetch=0,
            grid=(grid,),
            in_specs=[in_spec],
            out_specs=pl.BlockSpec((tm, 128), lambda i: (i, 0)),
        ),
        compiler_params=pltpu.CompilerParams(
            dimension_semantics=("parallel",)),
    )(x)
    return out.reshape(-1)[:n]


def iou_loss(pred, target, *, reduction="none", loss_type="iou", block_n=16384):
    """Pallas-TPU equivalent of IOUloss.forward.

    block_n: boxes per grid step (block_n // 128 sublane rows of 128 boxes).
    Default 16384 -> (8, 128, 128) input block, ~1.1 MiB double-buffered VMEM.
    """
    assert pred.shape[0] == target.shape[0]
    p = jnp.reshape(pred, (-1, 4))
    t = jnp.reshape(target, (-1, 4))
    assert p.shape == t.shape
    n = p.shape[0]

    m = _cdiv(n, 128)
    tm = _choose_tm(m, block_n)
    grid = _cdiv(m, tm)
    m_pad = grid * tm
    n_pad = m_pad * 128

    # Single relayout pass (XLA fuses concat + pad + transpose + reshape);
    # native dtype kept -- f32 upcast happens per-plane inside the kernel.
    x = jnp.concatenate([p, t], axis=1)              # (n, 8)
    x = jnp.pad(x, ((0, n_pad - n), (0, 0)))         # zero tail (masked/sliced)
    x = x.T.reshape(8, m_pad, 128)                   # planar, lane-dense

    return _run_planar(x, n, tm, reduction=reduction, loss_type=loss_type)


def iou_loss_planar(x, n, *, reduction="none", loss_type="iou", block_n=16384):
    """Producer-side planar entry: x is (8, M, 128) with planes
    [p_cx, p_cy, p_w, p_h, t_cx, t_cy, t_w, t_h], boxes row-major
    (box j -> row j // 128, lane j % 128), n = number of valid boxes.
    Skips the wrapper relayout pass entirely."""
    assert x.ndim == 3 and x.shape[0] == 8 and x.shape[2] == 128
    tm = _choose_tm(x.shape[1], block_n)
    return _run_planar(x, n, tm, reduction=reduction, loss_type=loss_type)


def _reference(pred, target, reduction="none", loss_type="iou"):
    pred = jnp.reshape(pred, (-1, 4)).astype(jnp.float32)
    target = jnp.reshape(target, (-1, 4)).astype(jnp.float32)
    tl = jnp.maximum(pred[:, :2] - pred[:, 2:] / 2, target[:, :2] - target[:, 2:] / 2)
    br = jnp.minimum(pred[:, :2] + pred[:, 2:] / 2, target[:, :2] + target[:, 2:] / 2)
    area_p = jnp.prod(pred[:, 2:], axis=1)
    area_g = jnp.prod(target[:, 2:], axis=1)
    en = jnp.all(tl < br, axis=1).astype(jnp.float32)
    area_i = jnp.prod(br - tl, axis=1) * en
    area_u = area_p + area_g - area_i
    iou = area_i / (area_u + 1e-16)
    if loss_type == "iou":
        loss = 1 - iou ** 2
    else:
        c_tl = jnp.minimum(pred[:, :2] - pred[:, 2:] / 2, target[:, :2] - target[:, 2:] / 2)
        c_br = jnp.maximum(pred[:, :2] + pred[:, 2:] / 2, target[:, :2] + target[:, 2:] / 2)
        area_c = jnp.prod(c_br - c_tl, axis=1)
        giou = iou - (area_c - area_u) / (area_c + 1e-16)
        loss = 1 - jnp.clip(giou, -1.0, 1.0)
    if reduction == "mean":
        loss = loss.mean()
    elif reduction == "sum":
        loss = loss.sum()
    return loss


if __name__ == "__main__":
    key = jax.random.PRNGKey(0)
    k1, k2, k3, k4 = jax.random.split(key, 4)

    B, NB = 2, 8          # batch 2, 8 boxes each -> (16, 4) after view(-1, 4)
    pred = jnp.concatenate(
        [jax.random.uniform(k1, (B, NB, 2)) * 16.0,
         jax.random.uniform(k2, (B, NB, 2)) * 4.0 + 0.5], axis=-1)
    target = jnp.concatenate(
        [jax.random.uniform(k3, (B, NB, 2)) * 16.0,
         jax.random.uniform(k4, (B, NB, 2)) * 4.0 + 0.5], axis=-1)

    TOL = dict(atol=1e-4, rtol=1e-4)   # approx-recip + 1 NR step ~ f32 accurate
    failures = []

    def _check(out, ref, tag):
        if not jnp.allclose(out, ref, **TOL):
            failures.append(tag)

    for loss_type in ("iou", "giou"):
        for reduction in ("none", "mean", "sum"):
            out = jax.block_until_ready(
                iou_loss(pred, target, reduction=reduction, loss_type=loss_type))
            ref = _reference(pred, target, reduction=reduction, loss_type=loss_type)
            _check(out, ref, f"{loss_type}/{reduction}")

    # Native bf16 inputs: relayout stays bf16, kernel upcasts per-plane.
    pred_bf = pred.astype(jnp.bfloat16)
    target_bf = target.astype(jnp.bfloat16)
    out_bf = jax.block_until_ready(iou_loss(pred_bf, target_bf, loss_type="giou"))
    _check(out_bf, _reference(pred_bf, target_bf, loss_type="giou"), "bf16/giou")

    # Multi-step grid + ragged tail + fused-reduction masking:
    # 3000 boxes, block_n=1024 -> tm=8, 3 grid steps, 72 zero-padded boxes.
    k5, k6, k7, k8 = jax.random.split(jax.random.PRNGKey(1), 4)
    B2, NB2 = 3, 1000
    pred2 = jnp.concatenate(
        [jax.random.uniform(k5, (B2, NB2, 2)) * 16.0,
         jax.random.uniform(k6, (B2, NB2, 2)) * 4.0 + 0.5], axis=-1)
    target2 = jnp.concatenate(
        [jax.random.uniform(k7, (B2, NB2, 2)) * 16.0,
         jax.random.uniform(k8, (B2, NB2, 2)) * 4.0 + 0.5], axis=-1)
    for loss_type, reduction in (("giou", "none"), ("giou", "sum"), ("iou", "mean")):
        out2 = jax.block_until_ready(
            iou_loss(pred2, target2, reduction=reduction, loss_type=loss_type,
                     block_n=1024))
        ref2 = _reference(pred2, target2, reduction=reduction, loss_type=loss_type)
        _check(out2, ref2, f"multiblock/{loss_type}/{reduction}")

    # Producer-supplied planar (8, M, 128) layout: skips the relayout pass.
    p2d = jnp.reshape(pred, (-1, 4))
    t2d = jnp.reshape(target, (-1, 4))
    n_small = p2d.shape[0]
    m_prod = 8                                    # producer keeps M a multiple of 8
    xcat = jnp.concatenate([p2d, t2d], axis=1)    # (n, 8)
    xcat = jnp.pad(xcat, ((0, m_prod * 128 - n_small), (0, 0)))
    x_planar = xcat.T.reshape(8, m_prod, 128)
    out_p = jax.block_until_ready(
        iou_loss_planar(x_planar, n_small, reduction="sum", loss_type="iou"))
    _check(out_p, _reference(pred, target, reduction="sum", loss_type="iou"),
           "planar/iou/sum")

    if failures:
        print("KERNEL_MISMATCH:", failures)
    else:
        print("KERNEL_OK")
</pallas_src>

<mosaic_0001>
module attributes {stable_mosaic.version = 11 : i64} {
  func.func @_iou_loss_map_kernel(%arg0: i32, %arg1: memref<8x8x128xf32, #tpu.memory_space<vmem>>, %arg2: memref<8x128xf32, #tpu.memory_space<vmem>>) attributes {dimension_semantics = [#tpu.dimension_semantics<parallel>], iteration_bounds = array<i64: 1>, scalar_prefetch = 0 : i64, scratch_operands = 0 : i64, tpu.core_type = #tpu.core_type<tc>, window_params = [{transform_indices = @transform_0, window_bounds = array<i64: 8, 8, 128>}, {transform_indices = @transform_1, window_bounds = array<i64: 8, 128>}]} {
    %c0 = arith.constant 0 : index
    %c0_0 = arith.constant 0 : index
    %c0_1 = arith.constant 0 : index
    %0 = vector.load %arg1[%c0, %c0_0, %c0_1] : memref<8x8x128xf32, #tpu.memory_space<vmem>>, vector<1x8x128xf32>
    %1 = vector.shape_cast %0 : vector<1x8x128xf32> to vector<8x128xf32>
    %c1 = arith.constant 1 : index
    %c0_2 = arith.constant 0 : index
    %c0_3 = arith.constant 0 : index
    %2 = vector.load %arg1[%c1, %c0_2, %c0_3] : memref<8x8x128xf32, #tpu.memory_space<vmem>>, vector<1x8x128xf32>
    %3 = vector.shape_cast %2 : vector<1x8x128xf32> to vector<8x128xf32>
    %c2 = arith.constant 2 : index
    %c0_4 = arith.constant 0 : index
    %c0_5 = arith.constant 0 : index
    %4 = vector.load %arg1[%c2, %c0_4, %c0_5] : memref<8x8x128xf32, #tpu.memory_space<vmem>>, vector<1x8x128xf32>
    %5 = vector.shape_cast %4 : vector<1x8x128xf32> to vector<8x128xf32>
    %c3 = arith.constant 3 : index
    %c0_6 = arith.constant 0 : index
    %c0_7 = arith.constant 0 : index
    %6 = vector.load %arg1[%c3, %c0_6, %c0_7] : memref<8x8x128xf32, #tpu.memory_space<vmem>>, vector<1x8x128xf32>
    %7 = vector.shape_cast %6 : vector<1x8x128xf32> to vector<8x128xf32>
    %c4 = arith.constant 4 : index
    %c0_8 = arith.constant 0 : index
    %c0_9 = arith.constant 0 : index
    %8 = vector.load %arg1[%c4, %c0_8, %c0_9] : memref<8x8x128xf32, #tpu.memory_space<vmem>>, vector<1x8x128xf32>
    %9 = vector.shape_cast %8 : vector<1x8x128xf32> to vector<8x128xf32>
    %c5 = arith.constant 5 : index
    %c0_10 = arith.constant 0 : index
    %c0_11 = arith.constant 0 : index
    %10 = vector.load %arg1[%c5, %c0_10, %c0_11] : memref<8x8x128xf32, #tpu.memory_space<vmem>>, vector<1x8x128xf32>
    %11 = vector.shape_cast %10 : vector<1x8x128xf32> to vector<8x128xf32>
    %c6 = arith.constant 6 : index
    %c0_12 = arith.constant 0 : index
    %c0_13 = arith.constant 0 : index
    %12 = vector.load %arg1[%c6, %c0_12, %c0_13] : memref<8x8x128xf32, #tpu.memory_space<vmem>>, vector<1x8x128xf32>
    %13 = vector.shape_cast %12 : vector<1x8x128xf32> to vector<8x128xf32>
    %c7 = arith.constant 7 : index
    %c0_14 = arith.constant 0 : index
    %c0_15 = arith.constant 0 : index
    %14 = vector.load %arg1[%c7, %c0_14, %c0_15] : memref<8x8x128xf32, #tpu.memory_space<vmem>>, vector<1x8x128xf32>
    %15 = vector.shape_cast %14 : vector<1x8x128xf32> to vector<8x128xf32>
    %cst = arith.constant 5.000000e-01 : f32
    %16 = vector.broadcast %cst : f32 to vector<8x128xf32>
    %17 = arith.mulf %5, %16 : vector<8x128xf32>
    %cst_16 = arith.constant 5.000000e-01 : f32
    %18 = vector.broadcast %cst_16 : f32 to vector<8x128xf32>
    %19 = arith.mulf %7, %18 : vector<8x128xf32>
    %cst_17 = arith.constant 5.000000e-01 : f32
    %20 = vector.broadcast %cst_17 : f32 to vector<8x128xf32>
    %21 = arith.mulf %13, %20 : vector<8x128xf32>
    %cst_18 = arith.constant 5.000000e-01 : f32
    %22 = vector.broadcast %cst_18 : f32 to vector<8x128xf32>
    %23 = arith.mulf %15, %22 : vector<8x128xf32>
    %24 = arith.subf %1, %17 : vector<8x128xf32>
    %25 = arith.addf %1, %17 : vector<8x128xf32>
    %26 = arith.subf %3, %19 : vector<8x128xf32>
    %27 = arith.addf %3, %19 : vector<8x128xf32>
    %28 = arith.subf %9, %21 : vector<8x128xf32>
    %29 = arith.addf %9, %21 : vector<8x128xf32>
    %30 = arith.subf %11, %23 : vector<8x128xf32>
    %31 = arith.addf %11, %23 : vector<8x128xf32>
    %32 = arith.maximumf %24, %28 : vector<8x128xf32>
    %33 = arith.maximumf %26, %30 : vector<8x128xf32>
    %34 = arith.minimumf %25, %29 : vector<8x128xf32>
    %35 = arith.minimumf %27, %31 : vector<8x128xf32>
    %36 = arith.mulf %5, %7 : vector<8x128xf32>
    %37 = arith.mulf %13, %15 : vector<8x128xf32>
    %38 = arith.cmpf olt, %32, %34 : vector<8x128xf32>
    %39 = arith.cmpf olt, %33, %35 : vector<8x128xf32>
    %40 = arith.andi %38, %39 : vector<8x128xi1>
    %41 = arith.subf %34, %32 : vector<8x128xf32>
    %42 = arith.subf %35, %33 : vector<8x128xf32>
    %43 = arith.mulf %41, %42 : vector<8x128xf32>
    %cst_19 = arith.constant 0.000000e+00 : f32
    %44 = vector.broadcast %cst_19 : f32 to vector<8x128xf32>
    %45 = arith.select %40, %43, %44 : vector<8x128xi1>, vector<8x128xf32>
    %46 = arith.addf %36, %37 : vector<8x128xf32>
    %47 = arith.subf %46, %45 : vector<8x128xf32>
    %cst_20 = arith.constant 1.000000e-16 : f32
    %48 = vector.broadcast %cst_20 : f32 to vector<8x128xf32>
    %49 = arith.addf %47, %48 : vector<8x128xf32>
    %50 = tpu.reciprocal %49 {approx = true} : vector<8x128xf32> -> vector<8x128xf32>
    %51 = arith.mulf %49, %50 : vector<8x128xf32>
    %cst_21 = arith.constant 2.000000e+00 : f32
    %52 = vector.broadcast %cst_21 : f32 to vector<8x128xf32>
    %53 = arith.subf %52, %51 : vector<8x128xf32>
    %54 = arith.mulf %50, %53 : vector<8x128xf32>
    %55 = arith.mulf %45, %54 : vector<8x128xf32>
    %56 = arith.mulf %55, %55 : vector<8x128xf32>
    %cst_22 = arith.constant 1.000000e+00 : f32
    %57 = vector.broadcast %cst_22 : f32 to vector<8x128xf32>
    %58 = arith.subf %57, %56 : vector<8x128xf32>
    %c0_23 = arith.constant 0 : index
    %c0_24 = arith.constant 0 : index
    %59 = vector.load %arg2[%c0_23, %c0_24] : memref<8x128xf32, #tpu.memory_space<vmem>>, vector<8x128xf32>
    tpu.vector_store %arg2[%c0_23, %c0_24], %58 {strides = array<i32>} : memref<8x128xf32, #tpu.memory_space<vmem>>, vector<8x128xf32>,
    return
  }
  func.func @transform_0(%arg0: i32) -> (i32, i32, i32) {
    %c0_i32 = arith.constant 0 : i32
    %c0_i32_0 = arith.constant 0 : i32
    %c0_i32_1 = arith.constant 0 : i32
    return %c0_i32, %arg0, %c0_i32_0 : i32, i32, i32
  }
  func.func @transform_1(%arg0: i32) -> (i32, i32) {
    %c0_i32 = arith.constant 0 : i32
    %c0_i32_0 = arith.constant 0 : i32
    return %arg0, %c0_i32 : i32, i32
  }
}

</mosaic_0001>

<llo_original>
// kernel: tpu_custom_call.1
$region0: #{tpu_custom_call.1}
  #allocation0 [shape = 'u32[]', space=smem, size = 0x4, offset = 0x4, fixed_abs, tag = 'smem constant byte address 0x4 - core index']
  #allocation1 [shape = 'u32[144,128]{1,0:T(1,128)}', space=vmem, size = 0x12000, scoped, tag = 'internal scratch']
  %s0 = inlined_call_operand.hbm [shape: f32[8,8,128], index: 0, kind: input, shape index: {}]
  %s1 = inlined_call_operand.hbm [shape: f32[8,128], index: 1, kind: output, shape index: {}]
  %s2 = sld [smem:[#allocation0]]
  $region18: #{tpu_custom_call.1} parent=0
    _
  %s4 = ssub.s32 1, %s2
  %s5 = scalar_select 0, %s4, %s2
  $region1: #{tpu_custom_call.1} parent=0
    #allocation2 [shape = 'u8[32768]{0}', space=vmem, size = 0x8000, scoped, tag = 'input window, operand 0, single buffered']
    #allocation3 [shape = 's32[1]{0}', space=sflag, size = 0x4, scoped, tag = 'scoped memory for tpu_custom_call.1']
    #allocation4 [shape = 's32[1]{0}', space=sflag, size = 0x4, scoped, tag = 'scoped memory for tpu_custom_call.1']
    #allocation5 [shape = 'u8[4096]{0}', space=vmem, size = 0x1000, scoped, tag = 'output window, operand 0, single buffered']
    %6 = vsyncpa [#allocation3], 0
    %7 = vsyncpa [#allocation4], 0
    // Predicated region
    $region2: #{tpu_custom_call.1} parent=1 // pred_check
      _
    $region3: #{tpu_custom_call.1} parent=1 // pred_check_branch
      %9 = sbr.rel (0) target = $region5
    $region4: #{tpu_custom_call.1} parent=1 // pred_region
      %s11 = ssub.s32 1024, 1024
      %12 = vsyncadd [#allocation3], %s11
      %s13 = sshll.u32 [#allocation2], 4
      %s14 = int_to_ptr.vmem [resolvable:$true] %s13
      %19 = dma.hbm_to_vmem [thread:$0]  %s0, 1024, %s14, [#allocation3], 128, 128, 8
    $region5: #{tpu_custom_call.1} parent=1 // pred_fallthru
      _
    // Predicated region
    $region6: #{tpu_custom_call.1} parent=1 // pred_check
      _
    $region7: #{tpu_custom_call.1} parent=1 // pred_check_branch
      %21 = sbr.rel (0) target = $region9
    $region8: #{tpu_custom_call.1} parent=1 // pred_region
      %22 = dma.done [#allocation3], 1024
    $region9: #{tpu_custom_call.1} parent=1 // pred_fallthru
      _
    %v23 = vld [vmem:[#allocation2] sm:$0xff]
    %s24 = scalar_lea.vmem [#allocation2], 8
    %v25 = vld [vmem:[%s24] sm:$0xff]
    %s26 = scalar_lea.vmem [#allocation2], 16
    %v27 = vld [vmem:[%s26] sm:$0xff]
    %s28 = scalar_lea.vmem [#allocation2], 24
    %v29 = vld [vmem:[%s28] sm:$0xff]
    %s30 = scalar_lea.vmem [#allocation2], 32
    %v31 = vld [vmem:[%s30] sm:$0xff]
    %s32 = scalar_lea.vmem [#allocation2], 40
    %v33 = vld [vmem:[%s32] sm:$0xff]
    %s34 = scalar_lea.vmem [#allocation2], 48
    %v35 = vld [vmem:[%s34] sm:$0xff]
    %s36 = scalar_lea.vmem [#allocation2], 56
    %v37 = vld [vmem:[%s36] sm:$0xff]
    %v38 = vmul.f32 %v27, 0.5
    %v39 = vmul.f32 %v29, 0.5
    %v40 = vmul.f32 %v35, 0.5
    %v41 = vmul.f32 %v37, 0.5
    %v42 = vsub.f32 %v23, %v38
    %v43 = vadd.f32 %v23, %v38
    %v44 = vsub.f32 %v25, %v39
    %v45 = vadd.f32 %v25, %v39
    %v46 = vsub.f32 %v31, %v40
    %v47 = vadd.f32 %v31, %v40
    %v48 = vsub.f32 %v33, %v41
    %v49 = vadd.f32 %v33, %v41
    %v50 = vmax.f32 %v42, %v46
    %v51 = vmax.f32 %v44, %v48
    %v52 = vmin.f32 %v43, %v47
    %v53 = vmin.f32 %v45, %v49
    %v54 = vmul.f32 %v27, %v29
    %v55 = vmul.f32 %v35, %v37
    %vm56 = vcmp.lt.f32.partialorder %v50, %v52
    %vm57 = vcmp.lt.f32.partialorder %v51, %v53
    %vm58 = vmand %vm56, %vm57
    %v59 = vsub.f32 %v52, %v50
    %v60 = vsub.f32 %v53, %v51
    %v61 = vmul.f32 %v59, %v60
    %v62 = vsel %vm58, %v61, 0.0
    %v63 = vadd.f32 %v54, %v55
    %v64 = vsub.f32 %v63, %v62
    %v65 = vadd.f32 %v64, 1e-16
    %v66 = vrcp.pop %v65
    %v67 = vmul.f32 %v65, %v66
    %v68 = vsub.f32 2.0, %v67
    %v69 = vmul.f32 %v66, %v68
    %v70 = vmul.f32 %v62, %v69
    %v71 = vmul.f32 %v70, %v70
    %v72 = vsub.f32 1.0, %v71
    %73 = vst [vmem:[#allocation5] sm:$0xff] %v72
    // Predicated region
    $region10: #{tpu_custom_call.1} parent=1 // pred_check
      _
    $region11: #{tpu_custom_call.1} parent=1 // pred_check_branch
      %75 = sbr.rel (0) target = $region13
    $region12: #{tpu_custom_call.1} parent=1 // pred_region
      %s77 = ssub.s32 128, 128
      %78 = vsyncadd [#allocation4], %s77
      %s80 = sshll.u32 [#allocation5], 4
      %s81 = int_to_ptr.vmem [resolvable:$true] %s80
      %83 = dma.vmem_to_hbm [thread:$0]  %s81, 128, %s1, [#allocation4]
    $region13: #{tpu_custom_call.1} parent=1 // pred_fallthru
      _
    // Predicated region
    $region14: #{tpu_custom_call.1} parent=1 // pred_check
      _
    $region15: #{tpu_custom_call.1} parent=1 // pred_check_branch
      %85 = sbr.rel (0) target = $region17
    $region16: #{tpu_custom_call.1} parent=1 // pred_region
      %86 = dma.done [#allocation4], 128
    $region17: #{tpu_custom_call.1} parent=1 // pred_fallthru
      _
    %87 = vsyncpa [#allocation3], 1
    %88 = vsyncpa [#allocation4], 1

</llo_original>
